<compile_context>
chip_gen: v7x
topology: tpu7x:2x2x1
jax: 0.10.0
libtpu: 0.0.40
codegen_flags: <defaults>
</compile_context>

<pallas_src>
import math

import jax
import jax.numpy as jnp
from jax.experimental import pallas as pl
from jax.experimental.pallas import tpu as pltpu


HALF_LOG_2PI = 0.5 * math.log(2.0 * math.pi)


def _round_up(n, m):
    return ((n + m - 1) // m) * m


def policy_kernel(xT_ref, w1T_ref, b1_ref, whT_ref, bh_ref, epsT_ref,
                  act_ref, logp_ref):
    # Lane-dense: batch is the last (lane) dimension everywhere.
    xT = xT_ref[...]                                            # (5, TB)

    # fc1 + ReLU  (MXU matmul, f32 accumulation)
    h = jnp.dot(w1T_ref[...], xT, preferred_element_type=jnp.float32)
    h = jnp.maximum(h + b1_ref[...], 0.0)                       # (128, TB)

    # Fused mu / std heads: single (2, 128) @ (128, TB) matmul.
    heads = jnp.dot(whT_ref[...], h, preferred_element_type=jnp.float32)
    heads = heads + bh_ref[...]                                 # (2, TB)
    mu = heads[0:1, :]                                          # (1, TB)
    pre_std = heads[1:2, :]                                     # (1, TB)
    std = jax.nn.softplus(pre_std)                              # (1, TB)

    # Reparameterized sample + Normal log_prob.
    # (action - mu) == std * eps exactly, so the quadratic term reduces to
    # -0.5 * eps^2 (no square / divide needed).
    eps = epsT_ref[...]                                         # (1, TB)
    action = mu + std * eps
    log_prob = -0.5 * eps * eps - jnp.log(std) - HALF_LOG_2PI

    # tanh squash + log-det correction (matches the 1e-7 form of the module).
    t = jnp.tanh(action)
    act_ref[...] = t
    logp_ref[...] = log_prob - jnp.log(1.0 - t * t + 1e-7)


def policy_net_forward(x, params, eps, *, tb_max=1024):
    """x: (B, 5) f32, eps: (B, 1) f32 -> (real_action (B,1), real_log_prob (B,1))."""
    B = x.shape[0]

    # Batch tile: multiple of 128 (lane width), bounded so it fits easily in
    # v7x's 64 MiB VMEM (live tile footprint ~0.6 MiB at TB=1024).
    TB = min(tb_max, _round_up(B, 128))
    Bpad = _round_up(B, TB)
    pad = Bpad - B

    # Layout plumbing (outside the kernel): pad + transpose so batch is the
    # lane axis; fuse the two heads into one weight / bias.
    x_pad = jnp.pad(x, ((0, pad), (0, 0)))
    eps_pad = jnp.pad(eps, ((0, pad), (0, 0)))
    xT = x_pad.T                                                # (5, Bpad)
    epsT = eps_pad.T                                            # (1, Bpad)
    w1T = params["w1"].T                                        # (128, 5)
    b1 = params["b1"].reshape(128, 1)                           # (128, 1)
    whT = jnp.concatenate([params["w_mu"], params["w_std"]], axis=1).T  # (2, 128)
    bh = jnp.concatenate([params["b_mu"], params["b_std"]], axis=1).T   # (2, 1)

    grid = (Bpad // TB,)
    out_shape = (
        jax.ShapeDtypeStruct((1, Bpad), jnp.float32),  # real_action (transposed)
        jax.ShapeDtypeStruct((1, Bpad), jnp.float32),  # real_log_prob (transposed)
    )

    act_t, logp_t = pl.pallas_call(
        policy_kernel,
        out_shape=out_shape,
        grid=grid,
        in_specs=[
            pl.BlockSpec((5, TB), lambda i: (0, i)),      # xT (batch-tiled)
            pl.BlockSpec((128, 5), lambda i: (0, 0)),     # W1^T (resident)
            pl.BlockSpec((128, 1), lambda i: (0, 0)),     # b1
            pl.BlockSpec((2, 128), lambda i: (0, 0)),     # fused heads W^T
            pl.BlockSpec((2, 1), lambda i: (0, 0)),       # fused heads bias
            pl.BlockSpec((1, TB), lambda i: (0, i)),      # eps^T (batch-tiled)
        ],
        out_specs=(
            pl.BlockSpec((1, TB), lambda i: (0, i)),
            pl.BlockSpec((1, TB), lambda i: (0, i)),
        ),
        compiler_params=pltpu.CompilerParams(
            dimension_semantics=("parallel",),            # v7x: shard over 2 TCs
            vmem_limit_bytes=32 * 1024 * 1024,
        ),
    )(xT, w1T, b1, whT, bh, epsT)

    # Back to the module's (B, 1) layout, dropping padded rows.
    return act_t[:, :B].T, logp_t[:, :B].T


def init_params(key):
    """Deterministic PyTorch-style uniform(-1/sqrt(fan_in), 1/sqrt(fan_in)) init."""
    ks = jax.random.split(key, 6)

    def unif(k, shape, fan_in):
        bound = 1.0 / math.sqrt(fan_in)
        return jax.random.uniform(k, shape, jnp.float32, -bound, bound)

    return {
        "w1":    unif(ks[0], (5, 128), 5),
        "b1":    unif(ks[1], (1, 128), 5),
        "w_mu":  unif(ks[2], (128, 1), 128),
        "b_mu":  unif(ks[3], (1, 1), 128),
        "w_std": unif(ks[4], (128, 1), 128),
        "b_std": unif(ks[5], (1, 1), 128),
    }


def reference_forward(x, params, eps):
    """Pure-JAX reference (written in the original, un-simplified form)."""
    h = jax.nn.relu(x @ params["w1"] + params["b1"])
    mu = h @ params["w_mu"] + params["b_mu"]
    std = jax.nn.softplus(h @ params["w_std"] + params["b_std"])
    action = mu + std * eps
    log_prob = -((action - mu) ** 2) / (2.0 * std * std) - jnp.log(std) - HALF_LOG_2PI
    t = jnp.tanh(action)
    return t, log_prob - jnp.log(1.0 - t * t + 1e-7)


if __name__ == "__main__":
    key = jax.random.PRNGKey(0)
    k_param, k_x, k_eps = jax.random.split(key, 3)

    B = 8                                   # small test batch (padded to 128 internally)
    params = init_params(k_param)
    x = jax.random.normal(k_x, (B, 5), dtype=jnp.float32)
    eps = jax.random.normal(k_eps, (B, 1), dtype=jnp.float32)   # rsample() noise

    real_action, real_log_prob = policy_net_forward(x, params, eps)
    jax.block_until_ready((real_action, real_log_prob))

    ref_action, ref_log_prob = reference_forward(x, params, eps)
    assert real_action.shape == (B, 1) and real_log_prob.shape == (B, 1)
    assert jnp.allclose(real_action, ref_action, atol=1e-5), "action mismatch"
    assert jnp.allclose(real_log_prob, ref_log_prob, atol=1e-4), "log_prob mismatch"

    print("KERNEL_OK")
</pallas_src>

<mosaic_0001>
module attributes {stable_mosaic.version = 11 : i64} {
  func.func @policy_kernel(%arg0: i32, %arg1: memref<5x128xf32, #tpu.memory_space<vmem>>, %arg2: memref<128x5xf32, #tpu.memory_space<vmem>>, %arg3: memref<128x1xf32, #tpu.memory_space<vmem>>, %arg4: memref<2x128xf32, #tpu.memory_space<vmem>>, %arg5: memref<2x1xf32, #tpu.memory_space<vmem>>, %arg6: memref<1x128xf32, #tpu.memory_space<vmem>>, %arg7: memref<1x128xf32, #tpu.memory_space<vmem>>, %arg8: memref<1x128xf32, #tpu.memory_space<vmem>>) attributes {dimension_semantics = [#tpu.dimension_semantics<parallel>], iteration_bounds = array<i64: 1>, scalar_prefetch = 0 : i64, scratch_operands = 0 : i64, tpu.core_type = #tpu.core_type<tc>, window_params = [{transform_indices = @transform_0, window_bounds = array<i64: 5, 128>}, {pipeline_mode = #tpu.pipeline_mode<synchronous>, transform_indices = @transform_1, window_bounds = array<i64: 128, 5>}, {pipeline_mode = #tpu.pipeline_mode<synchronous>, transform_indices = @transform_2, window_bounds = array<i64: 128, 1>}, {pipeline_mode = #tpu.pipeline_mode<synchronous>, transform_indices = @transform_3, window_bounds = array<i64: 2, 128>}, {pipeline_mode = #tpu.pipeline_mode<synchronous>, transform_indices = @transform_4, window_bounds = array<i64: 2, 1>}, {transform_indices = @transform_5, window_bounds = array<i64: 1, 128>}, {transform_indices = @transform_6, window_bounds = array<i64: 1, 128>}, {transform_indices = @transform_7, window_bounds = array<i64: 1, 128>}]} {
    %c0 = arith.constant 0 : index
    %c0_0 = arith.constant 0 : index
    %0 = vector.load %arg1[%c0, %c0_0] : memref<5x128xf32, #tpu.memory_space<vmem>>, vector<5x128xf32>
    %c0_1 = arith.constant 0 : index
    %c0_2 = arith.constant 0 : index
    %1 = vector.load %arg2[%c0_1, %c0_2] : memref<128x5xf32, #tpu.memory_space<vmem>>, vector<128x5xf32>
    %cst = arith.constant dense<0.000000e+00> : vector<128x128xf32>
    %2 = tpu.matmul %1, %0, %cst {dimension_numbers = #tpu.dot_dimension_numbers<[1], [0], [0], [1], [0, 0, 1, 1], [], []>} : vector<128x5xf32>, vector<5x128xf32>, vector<128x128xf32> -> vector<128x128xf32>
    %c0_3 = arith.constant 0 : index
    %c0_4 = arith.constant 0 : index
    %3 = vector.load %arg3[%c0_3, %c0_4] : memref<128x1xf32, #tpu.memory_space<vmem>>, vector<128x1xf32>
    %4 = vector.broadcast %3 : vector<128x1xf32> to vector<128x128xf32>
    %5 = arith.addf %2, %4 : vector<128x128xf32>
    %cst_5 = arith.constant 0.000000e+00 : f32
    %6 = vector.broadcast %cst_5 : f32 to vector<128x128xf32>
    %7 = arith.maximumf %5, %6 : vector<128x128xf32>
    %c0_6 = arith.constant 0 : index
    %c0_7 = arith.constant 0 : index
    %8 = vector.load %arg4[%c0_6, %c0_7] : memref<2x128xf32, #tpu.memory_space<vmem>>, vector<2x128xf32>
    %cst_8 = arith.constant dense<0.000000e+00> : vector<2x128xf32>
    %9 = tpu.matmul %8, %7, %cst_8 {dimension_numbers = #tpu.dot_dimension_numbers<[1], [0], [0], [1], [0, 0, 1, 1], [], []>} : vector<2x128xf32>, vector<128x128xf32>, vector<2x128xf32> -> vector<2x128xf32>
    %c0_9 = arith.constant 0 : index
    %c0_10 = arith.constant 0 : index
    %10 = vector.load %arg5[%c0_9, %c0_10] : memref<2x1xf32, #tpu.memory_space<vmem>>, vector<2x1xf32>
    %11 = vector.broadcast %10 : vector<2x1xf32> to vector<2x128xf32>
    %12 = arith.addf %9, %11 : vector<2x128xf32>
    %13 = vector.extract_strided_slice %12 {offsets = [0, 0], sizes = [1, 128], strides = [1, 1]} : vector<2x128xf32> to vector<1x128xf32>
    %14 = vector.extract_strided_slice %12 {offsets = [1, 0], sizes = [1, 128], strides = [1, 1]} : vector<2x128xf32> to vector<1x128xf32>
    %cst_11 = arith.constant 0.000000e+00 : f32
    %15 = vector.broadcast %cst_11 : f32 to vector<1x128xf32>
    %16 = arith.maximumf %14, %15 : vector<1x128xf32>
    %17 = vector.broadcast %cst_11 : f32 to vector<1x128xf32>
    %18 = arith.subf %14, %17 : vector<1x128xf32>
    %19 = arith.cmpf one, %18, %18 : vector<1x128xf32>
    %20 = vector.broadcast %cst_11 : f32 to vector<1x128xf32>
    %21 = arith.addf %14, %20 : vector<1x128xf32>
    %22 = math.absf %18 : vector<1x128xf32>
    %cst_12 = arith.constant 0.000000e+00 : f32
    %23 = vector.broadcast %cst_12 : f32 to vector<1x128xf32>
    %24 = arith.subf %23, %22 : vector<1x128xf32>
    %25 = math.exp %24 : vector<1x128xf32>
    %26 = math.log1p %25 : vector<1x128xf32>
    %27 = arith.addf %16, %26 : vector<1x128xf32>
    %28 = arith.select %19, %21, %27 : vector<1x128xi1>, vector<1x128xf32>
    %c0_13 = arith.constant 0 : index
    %c0_14 = arith.constant 0 : index
    %29 = vector.load %arg6[%c0_13, %c0_14] : memref<1x128xf32, #tpu.memory_space<vmem>>, vector<1x128xf32>
    %30 = arith.mulf %28, %29 : vector<1x128xf32>
    %31 = arith.addf %13, %30 : vector<1x128xf32>
    %cst_15 = arith.constant -5.000000e-01 : f32
    %32 = vector.broadcast %cst_15 : f32 to vector<1x128xf32>
    %33 = arith.mulf %32, %29 : vector<1x128xf32>
    %34 = arith.mulf %33, %29 : vector<1x128xf32>
    %35 = math.log %28 : vector<1x128xf32>
    %36 = arith.subf %34, %35 : vector<1x128xf32>
    %cst_16 = arith.constant 0.918938517 : f32
    %37 = vector.broadcast %cst_16 : f32 to vector<1x128xf32>
    %38 = arith.subf %36, %37 : vector<1x128xf32>
    %39 = math.tanh %31 : vector<1x128xf32>
    %c0_17 = arith.constant 0 : index
    %c0_18 = arith.constant 0 : index
    %40 = vector.load %arg7[%c0_17, %c0_18] : memref<1x128xf32, #tpu.memory_space<vmem>>, vector<1x128xf32>
    tpu.vector_store %arg7[%c0_17, %c0_18], %39 {strides = array<i32>} : memref<1x128xf32, #tpu.memory_space<vmem>>, vector<1x128xf32>,
    %41 = arith.mulf %39, %39 : vector<1x128xf32>
    %cst_19 = arith.constant 1.000000e+00 : f32
    %42 = vector.broadcast %cst_19 : f32 to vector<1x128xf32>
    %43 = arith.subf %42, %41 : vector<1x128xf32>
    %cst_20 = arith.constant 1.000000e-07 : f32
    %44 = vector.broadcast %cst_20 : f32 to vector<1x128xf32>
    %45 = arith.addf %43, %44 : vector<1x128xf32>
    %46 = math.log %45 : vector<1x128xf32>
    %47 = arith.subf %38, %46 : vector<1x128xf32>
    %c0_21 = arith.constant 0 : index
    %c0_22 = arith.constant 0 : index
    %48 = vector.load %arg8[%c0_21, %c0_22] : memref<1x128xf32, #tpu.memory_space<vmem>>, vector<1x128xf32>
    tpu.vector_store %arg8[%c0_21, %c0_22], %47 {strides = array<i32>} : memref<1x128xf32, #tpu.memory_space<vmem>>, vector<1x128xf32>,
    return
  }
  func.func @transform_0(%arg0: i32) -> (i32, i32) {
    %c0_i32 = arith.constant 0 : i32
    %c0_i32_0 = arith.constant 0 : i32
    return %c0_i32, %arg0 : i32, i32
  }
  func.func @transform_1(%arg0: i32) -> (i32, i32) {
    %c0_i32 = arith.constant 0 : i32
    %c0_i32_0 = arith.constant 0 : i32
    %c0_i32_1 = arith.constant 0 : i32
    return %c0_i32, %c0_i32_0 : i32, i32
  }
  func.func @transform_2(%arg0: i32) -> (i32, i32) {
    %c0_i32 = arith.constant 0 : i32
    %c0_i32_0 = arith.constant 0 : i32
    %c0_i32_1 = arith.constant 0 : i32
    return %c0_i32, %c0_i32_0 : i32, i32
  }
  func.func @transform_3(%arg0: i32) -> (i32, i32) {
    %c0_i32 = arith.constant 0 : i32
    %c0_i32_0 = arith.constant 0 : i32
    %c0_i32_1 = arith.constant 0 : i32
    return %c0_i32, %c0_i32_0 : i32, i32
  }
  func.func @transform_4(%arg0: i32) -> (i32, i32) {
    %c0_i32 = arith.constant 0 : i32
    %c0_i32_0 = arith.constant 0 : i32
    %c0_i32_1 = arith.constant 0 : i32
    return %c0_i32, %c0_i32_0 : i32, i32
  }
  func.func @transform_5(%arg0: i32) -> (i32, i32) {
    %c0_i32 = arith.constant 0 : i32
    %c0_i32_0 = arith.constant 0 : i32
    return %c0_i32, %arg0 : i32, i32
  }
  func.func @transform_6(%arg0: i32) -> (i32, i32) {
    %c0_i32 = arith.constant 0 : i32
    %c0_i32_0 = arith.constant 0 : i32
    return %c0_i32, %arg0 : i32, i32
  }
  func.func @transform_7(%arg0: i32) -> (i32, i32) {
    %c0_i32 = arith.constant 0 : i32
    %c0_i32_0 = arith.constant 0 : i32
    return %c0_i32, %arg0 : i32, i32
  }
}

</mosaic_0001>

<llo_original>
// kernel: tpu_custom_call.1
$region0: #{tpu_custom_call.1}
  #allocation0 [shape = 'u32[]', space=smem, size = 0x4, offset = 0x4, fixed_abs, tag = 'smem constant byte address 0x4 - core index']
  #allocation1 [shape = 'u32[144,128]{1,0:T(1,128)}', space=vmem, size = 0x12000, scoped, tag = 'internal scratch']
  %s0 = inlined_call_operand.vmem [shape: f32[5,128], index: 0, kind: input, shape index: {}]
  %s1 = inlined_call_operand.vmem [shape: f32[128,5], index: 1, kind: input, shape index: {}]
  %s2 = inlined_call_operand.vmem [shape: f32[128,1], index: 2, kind: input, shape index: {}]
  %s3 = inlined_call_operand.vmem [shape: f32[2,128], index: 3, kind: input, shape index: {}]
  %s4 = inlined_call_operand.vmem [shape: f32[2,1], index: 4, kind: input, shape index: {}]
  %s5 = inlined_call_operand.vmem [shape: f32[1,128], index: 5, kind: input, shape index: {}]
  %s6 = inlined_call_operand.hbm [shape: f32[1,128], index: 6, kind: output, shape index: {0}]
  %s7 = inlined_call_operand.hbm [shape: f32[1,128], index: 7, kind: output, shape index: {1}]
  %8 = xla_tuple %s6, %s7
  %s9 = sld [smem:[#allocation0]]
  $region42: #{tpu_custom_call.1} parent=0
    _
  %s11 = ssub.s32 1, %s9
  %s12 = scalar_select 0, %s11, %s9
  $region1: #{tpu_custom_call.1} parent=0
    #allocation2 [shape = 'u8[512]{0}', space=vmem, size = 0x400, scoped, tag = 'output window, operand 0, single buffered']
    #allocation3 [shape = 's32[1]{0}', space=sflag, size = 0x4, scoped, tag = 'scoped memory for tpu_custom_call.1']
    #allocation4 [shape = 'u8[512]{0}', space=vmem, size = 0x400, scoped, tag = 'output window, operand 1, single buffered']
    #allocation5 [shape = 's32[1]{0}', space=sflag, size = 0x4, scoped, tag = 'scoped memory for tpu_custom_call.1']
    %13 = vsyncpa [#allocation3], 0
    %14 = vsyncpa [#allocation5], 0
    // Predicated region
    $region2: #{tpu_custom_call.1} parent=1 // pred_check
      _
    $region3: #{tpu_custom_call.1} parent=1 // pred_check_branch
      %16 = sbr.rel (0) target = $region5
    $region4: #{tpu_custom_call.1} parent=1 // pred_region
      _
    $region5: #{tpu_custom_call.1} parent=1 // pred_fallthru
      _
    // Predicated region
    $region6: #{tpu_custom_call.1} parent=1 // pred_check
      _
    $region7: #{tpu_custom_call.1} parent=1 // pred_check_branch
      %18 = sbr.rel (0) target = $region9
    $region8: #{tpu_custom_call.1} parent=1 // pred_region
      _
    $region9: #{tpu_custom_call.1} parent=1 // pred_fallthru
      _
    // Predicated region
    $region10: #{tpu_custom_call.1} parent=1 // pred_check
      _
    $region11: #{tpu_custom_call.1} parent=1 // pred_check_branch
      %20 = sbr.rel (0) target = $region13
    $region12: #{tpu_custom_call.1} parent=1 // pred_region
      _
    $region13: #{tpu_custom_call.1} parent=1 // pred_fallthru
      _
    // Predicated region
    $region14: #{tpu_custom_call.1} parent=1 // pred_check
      _
    $region15: #{tpu_custom_call.1} parent=1 // pred_check_branch
      %22 = sbr.rel (0) target = $region17
    $region16: #{tpu_custom_call.1} parent=1 // pred_region
      _
    $region17: #{tpu_custom_call.1} parent=1 // pred_fallthru
      _
    // Predicated region
    $region18: #{tpu_custom_call.1} parent=1 // pred_check
      _
    $region19: #{tpu_custom_call.1} parent=1 // pred_check_branch
      %24 = sbr.rel (0) target = $region21
    $region20: #{tpu_custom_call.1} parent=1 // pred_region
      _
    $region21: #{tpu_custom_call.1} parent=1 // pred_fallthru
      _
    // Predicated region
    $region22: #{tpu_custom_call.1} parent=1 // pred_check
      _
    $region23: #{tpu_custom_call.1} parent=1 // pred_check_branch
      %26 = sbr.rel (0) target = $region25
    $region24: #{tpu_custom_call.1} parent=1 // pred_region
      _
    $region25: #{tpu_custom_call.1} parent=1 // pred_fallthru
      _
    %v27 = vld [vmem:[%s0] sm:$0x1f]
    %v28 = vld [vmem:[%s1] sm:$0xff]
    %v29 = vld [vmem:[%s1 + $0x8] sm:$0xff]
    %v30 = vld [vmem:[%s1 + $0x10] sm:$0xff]
    %v31 = vld [vmem:[%s1 + $0x18] sm:$0xff]
    %v32 = vld [vmem:[%s1 + $0x20] sm:$0xff]
    %v33 = vld [vmem:[%s1 + $0x28] sm:$0xff]
    %v34 = vld [vmem:[%s1 + $0x30] sm:$0xff]
    %v35 = vld [vmem:[%s1 + $0x38] sm:$0xff]
    %v36 = vld [vmem:[%s1 + $0x40] sm:$0xff]
    %v37 = vld [vmem:[%s1 + $0x48] sm:$0xff]
    %v38 = vld [vmem:[%s1 + $0x50] sm:$0xff]
    %v39 = vld [vmem:[%s1 + $0x58] sm:$0xff]
    %v40 = vld [vmem:[%s1 + $0x60] sm:$0xff]
    %v41 = vld [vmem:[%s1 + $0x68] sm:$0xff]
    %v42 = vld [vmem:[%s1 + $0x70] sm:$0xff]
    %v43 = vld [vmem:[%s1 + $0x78] sm:$0xff]
    %v44 = vld [vmem:[%s2] sm:$0xff]
    %v45 = vld [vmem:[%s2 + $0x8] sm:$0xff]
    %v46 = vld [vmem:[%s2 + $0x10] sm:$0xff]
    %v47 = vld [vmem:[%s2 + $0x18] sm:$0xff]
    %v48 = vld [vmem:[%s2 + $0x20] sm:$0xff]
    %v49 = vld [vmem:[%s2 + $0x28] sm:$0xff]
    %v50 = vld [vmem:[%s2 + $0x30] sm:$0xff]
    %v51 = vld [vmem:[%s2 + $0x38] sm:$0xff]
    %v52 = vld [vmem:[%s2 + $0x40] sm:$0xff]
    %v53 = vld [vmem:[%s2 + $0x48] sm:$0xff]
    %v54 = vld [vmem:[%s2 + $0x50] sm:$0xff]
    %v55 = vld [vmem:[%s2 + $0x58] sm:$0xff]
    %v56 = vld [vmem:[%s2 + $0x60] sm:$0xff]
    %v57 = vld [vmem:[%s2 + $0x68] sm:$0xff]
    %v58 = vld [vmem:[%s2 + $0x70] sm:$0xff]
    %v59 = vld [vmem:[%s2 + $0x78] sm:$0xff]
    %61 = vset.pattern.permute.xlu0 0
    %62 = vperm.xlu0 %61, %v44
    %v63 = vpop.permute.xlu0 %62
    %66 = vset.pattern.permute.xlu0 0
    %67 = vperm.xlu0 %66, %v45
    %v68 = vpop.permute.xlu0 %67
    %71 = vset.pattern.permute.xlu0 0
    %72 = vperm.xlu0 %71, %v46
    %v73 = vpop.permute.xlu0 %72
    %76 = vset.pattern.permute.xlu0 0
    %77 = vperm.xlu0 %76, %v47
    %v78 = vpop.permute.xlu0 %77
    %81 = vset.pattern.permute.xlu0 0
    %82 = vperm.xlu0 %81, %v48
    %v83 = vpop.permute.xlu0 %82
    %86 = vset.pattern.permute.xlu0 0
    %87 = vperm.xlu0 %86, %v49
    %v88 = vpop.permute.xlu0 %87
    %91 = vset.pattern.permute.xlu0 0
    %92 = vperm.xlu0 %91, %v50
    %v93 = vpop.permute.xlu0 %92
    %96 = vset.pattern.permute.xlu0 0
    %97 = vperm.xlu0 %96, %v51
    %v98 = vpop.permute.xlu0 %97
    %101 = vset.pattern.permute.xlu0 0
    %102 = vperm.xlu0 %101, %v52
    %v103 = vpop.permute.xlu0 %102
    %106 = vset.pattern.permute.xlu0 0
    %107 = vperm.xlu0 %106, %v53
    %v108 = vpop.permute.xlu0 %107
    %111 = vset.pattern.permute.xlu0 0
    %112 = vperm.xlu0 %111, %v54
    %v113 = vpop.permute.xlu0 %112
    %116 = vset.pattern.permute.xlu0 0
    %117 = vperm.xlu0 %116, %v55
    %v118 = vpop.permute.xlu0 %117
    %121 = vset.pattern.permute.xlu0 0
    %122 = vperm.xlu0 %121, %v56
    %v123 = vpop.permute.xlu0 %122
    %126 = vset.pattern.permute.xlu0 0
    %127 = vperm.xlu0 %126, %v57
    %v128 = vpop.permute.xlu0 %127
    %131 = vset.pattern.permute.xlu0 0
    %132 = vperm.xlu0 %131, %v58
    %v133 = vpop.permute.xlu0 %132
    %136 = vset.pattern.permute.xlu0 0
    %137 = vperm.xlu0 %136, %v59
    %v138 = vpop.permute.xlu0 %137
    %vm140 = vcmask 39936
    %v142 = vsel %vm140, %v28, 0
    %v145 = vsel %vm140, %v29, 0
    %v148 = vsel %vm140, %v30, 0
    %v151 = vsel %vm140, %v31, 0
    %v154 = vsel %vm140, %v32, 0
    %v157 = vsel %vm140, %v33, 0
    %v160 = vsel %vm140, %v34, 0
    %v163 = vsel %vm140, %v35, 0
    %v166 = vsel %vm140, %v36, 0
    %v169 = vsel %vm140, %v37, 0
    %v172 = vsel %vm140, %v38, 0
    %v175 = vsel %vm140, %v39, 0
    %v178 = vsel %vm140, %v40, 0
    %v181 = vsel %vm140, %v41, 0
    %v184 = vsel %vm140, %v42, 0
    %v187 = vsel %vm140, %v43, 0
    %vm189 = vcmask 1044480
    %v191 = vsel %vm189, %v27, 0
    %193 = vmatprep.subr.mxu0 0.0
    %194 = vmatpush1.msra.mxu0 %v191
    %195 = vmatprep.subr.mxu0 0.0
    %196 = vmatpush1.msra.mxu0 0.0
    %197 = vmatprep.subr.mxu0 0.0
    %198 = vmatpush1.msra.mxu0 0.0
    %199 = vmatprep.subr.mxu0 0.0
    %200 = vmatpush1.msra.mxu0 0.0
    %201 = vmatprep.subr.mxu0 0.0
    %202 = vmatpush1.msra.mxu0 0.0
    %203 = vmatprep.subr.mxu0 0.0
    %204 = vmatpush1.msra.mxu0 0.0
    %205 = vmatprep.subr.mxu0 0.0
    %206 = vmatpush1.msra.mxu0 0.0
    %207 = vmatprep.subr.mxu0 0.0
    %208 = vmatpush1.msra.mxu0 0.0
    %209 = vmatprep.subr.mxu0 0.0
    %210 = vmatpush1.msra.mxu0 0.0
    %211 = vmatprep.subr.mxu0 0.0
    %212 = vmatpush1.msra.mxu0 0.0
    %213 = vmatprep.subr.mxu0 0.0
    %214 = vmatpush1.msra.mxu0 0.0
    %215 = vmatprep.subr.mxu0 0.0
    %216 = vmatpush1.msra.mxu0 0.0
    %217 = vmatprep.subr.mxu0 0.0
    %218 = vmatpush1.msra.mxu0 0.0
    %219 = vmatprep.subr.mxu0 0.0
    %220 = vmatpush1.msra.mxu0 0.0
    %221 = vmatprep.subr.mxu0 0.0
    %222 = vmatpush1.msra.mxu0 0.0
    %223 = vmatprep.subr.mxu0 0.0
    %224 = vmatpush1.msra.mxu0 0.0
    %225 = vmatprep.subr.mxu0 0.0
    %226 = vmatpush1.msra.mxu0 0.0
    %227 = vmatprep.subr.mxu0 0.0
    %228 = vmatpush1.msra.mxu0 0.0
    %229 = vmatprep.subr.mxu0 0.0
    %230 = vmatpush1.msra.mxu0 0.0
    %231 = vmatprep.subr.mxu0 0.0
    %232 = vmatpush1.msra.mxu0 0.0
    %233 = vmatprep.subr.mxu0 0.0
    %234 = vmatpush1.msra.mxu0 0.0
    %235 = vmatprep.subr.mxu0 0.0
    %236 = vmatpush1.msra.mxu0 0.0
    %237 = vmatprep.subr.mxu0 0.0
    %238 = vmatpush1.msra.mxu0 0.0
    %239 = vmatprep.subr.mxu0 0.0
    %240 = vmatpush1.msra.mxu0 0.0
    %241 = vmatprep.subr.mxu0 0.0
    %242 = vmatpush1.msra.mxu0 0.0
    %243 = vmatprep.subr.mxu0 0.0
    %244 = vmatpush1.msra.mxu0 0.0
    %245 = vmatprep.subr.mxu0 0.0
    %246 = vmatpush1.msra.mxu0 0.0
    %247 = vmatprep.subr.mxu0 0.0
    %248 = vmatpush1.msra.mxu0 0.0
    %249 = vmatprep.subr.mxu0 0.0
    %250 = vmatpush1.msra.mxu0 0.0
    %251 = vmatprep.subr.mxu0 0.0
    %252 = vmatpush1.msra.mxu0 0.0
    %253 = vmatprep.subr.mxu0 0.0
    %254 = vmatpush1.msra.mxu0 0.0
    %255 = vmatprep.subr.mxu0 0.0
    %256 = vmatpush1.msra.mxu0 0.0
    %257 = vmatprep.mubr.f32.mxu0 0.0
    %258 = vmatmul.mubr.f32.gmra.mrb[0].mxu0 %v142
    %v259 = vpop.f32.mrb[0].mxu0
    %v260 = vadd.f32 %v63, %v259
    %v261 = vpop.f32.mrb[0].mxu0
    %262 = vmatprep.mubr.f32.mxu0 0.0
    %263 = vmatmul.mubr.f32.gmra.mrb[0].mxu0 %v145
    %v264 = vpop.f32.mrb[0].mxu0
    %v265 = vadd.f32 %v68, %v264
    %v266 = vpop.f32.mrb[0].mxu0
    %267 = vmatprep.mubr.f32.mxu0 0.0
    %268 = vmatmul.mubr.f32.gmra.mrb[0].mxu0 %v148
    %v269 = vpop.f32.mrb[0].mxu0
    %v270 = vadd.f32 %v73, %v269
    %v271 = vpop.f32.mrb[0].mxu0
    %272 = vmatprep.mubr.f32.mxu0 0.0
    %273 = vmatmul.mubr.f32.gmra.mrb[0].mxu0 %v151
    %v274 = vpop.f32.mrb[0].mxu0
    %v275 = vadd.f32 %v78, %v274
    %v276 = vpop.f32.mrb[0].mxu0
    %277 = vmatprep.mubr.f32.mxu0 0.0
    %278 = vmatmul.mubr.f32.gmra.mrb[0].mxu0 %v154
    %v279 = vpop.f32.mrb[0].mxu0
    %v280 = vadd.f32 %v83, %v279
    %v281 = vpop.f32.mrb[0].mxu0
    %282 = vmatprep.mubr.f32.mxu0 0.0
    %283 = vmatmul.mubr.f32.gmra.mrb[0].mxu0 %v157
    %v284 = vpop.f32.mrb[0].mxu0
    %v285 = vadd.f32 %v88, %v284
    %v286 = vpop.f32.mrb[0].mxu0
    %287 = vmatprep.mubr.f32.mxu0 0.0
    %288 = vmatmul.mubr.f32.gmra.mrb[0].mxu0 %v160
    %v289 = vpop.f32.mrb[0].mxu0
    %v290 = vadd.f32 %v93, %v289
    %v291 = vpop.f32.mrb[0].mxu0
    %292 = vmatprep.mubr.f32.mxu0 0.0
    %293 = vmatmul.mubr.f32.gmra.mrb[0].mxu0 %v163
    %v294 = vpop.f32.mrb[0].mxu0
    %v295 = vadd.f32 %v98, %v294
    %v296 = vpop.f32.mrb[0].mxu0
    %297 = vmatprep.mubr.f32.mxu0 0.0
    %298 = vmatmul.mubr.f32.gmra.mrb[0].mxu0 %v166
    %v299 = vpop.f32.mrb[0].mxu0
    %v300 = vadd.f32 %v103, %v299
    %v301 = vpop.f32.mrb[0].mxu0
    %302 = vmatprep.mubr.f32.mxu0 0.0
    %303 = vmatmul.mubr.f32.gmra.mrb[0].mxu0 %v169
    %v304 = vpop.f32.mrb[0].mxu0
    %v305 = vadd.f32 %v108, %v304
    %v306 = vpop.f32.mrb[0].mxu0
    %307 = vmatprep.mubr.f32.mxu0 0.0
    %308 = vmatmul.mubr.f32.gmra.mrb[0].mxu0 %v172
    %v309 = vpop.f32.mrb[0].mxu0
    %v310 = vadd.f32 %v113, %v309
    %v311 = vpop.f32.mrb[0].mxu0
    %312 = vmatprep.mubr.f32.mxu0 0.0
    %313 = vmatmul.mubr.f32.gmra.mrb[0].mxu0 %v175
    %v314 = vpop.f32.mrb[0].mxu0
    %v315 = vadd.f32 %v118, %v314
    %v316 = vpop.f32.mrb[0].mxu0
    %317 = vmatprep.mubr.f32.mxu0 0.0
    %318 = vmatmul.mubr.f32.gmra.mrb[0].mxu0 %v178
    %v319 = vpop.f32.mrb[0].mxu0
    %v320 = vadd.f32 %v123, %v319
    %v321 = vpop.f32.mrb[0].mxu0
    %322 = vmatprep.mubr.f32.mxu0 0.0
    %323 = vmatmul.mubr.f32.gmra.mrb[0].mxu0 %v181
    %v324 = vpop.f32.mrb[0].mxu0
    %v325 = vadd.f32 %v128, %v324
    %v326 = vpop.f32.mrb[0].mxu0
    %327 = vmatprep.mubr.f32.mxu0 0.0
    %328 = vmatmul.mubr.f32.gmra.mrb[0].mxu0 %v184
    %v329 = vpop.f32.mrb[0].mxu0
    %v330 = vadd.f32 %v133, %v329
    %v331 = vpop.f32.mrb[0].mxu0
    %332 = vmatprep.mubr.f32.mxu0 0.0
    %333 = vmatmul.mubr.f32.gmra.mrb[0].mxu0 %v187
    %v334 = vpop.f32.mrb[0].mxu0
    %v335 = vadd.f32 %v138, %v334
    %v336 = vpop.f32.mrb[0].mxu0
    %337 = vdwg.mxu0
    %v338 = vmax.f32 %v260, 0.0
    %v339 = vmax.f32 %v265, 0.0
    %v340 = vmax.f32 %v270, 0.0
    %v341 = vmax.f32 %v275, 0.0
    %v342 = vmax.f32 %v280, 0.0
    %v343 = vmax.f32 %v285, 0.0
    %v344 = vmax.f32 %v290, 0.0
    %v345 = vmax.f32 %v295, 0.0
    %v346 = vmax.f32 %v300, 0.0
    %v347 = vmax.f32 %v305, 0.0
    %v348 = vmax.f32 %v310, 0.0
    %v349 = vmax.f32 %v315, 0.0
    %v350 = vmax.f32 %v320, 0.0
    %v351 = vmax.f32 %v325, 0.0
    %v352 = vmax.f32 %v330, 0.0
    %v353 = vmax.f32 %v335, 0.0
    %v354 = vld [vmem:[%s3] sm:$0x3]
    %v355 = vld [vmem:[%s4] sm:$0x3]
    %357 = vset.pattern.permute.xlu0 0
    %358 = vperm.xlu0 %357, %v355
    %v359 = vpop.permute.xlu0 %358
    %361 = vmatprep.subr.mxu0 0.0
    %362 = vmatpush1.msra.mxu0 %v338
    %363 = vmatprep.subr.mxu0 0.0
    %364 = vmatpush1.msra.mxu0 %v339
    %365 = vmatprep.subr.mxu0 0.0
    %366 = vmatpush1.msra.mxu0 %v340
    %367 = vmatprep.subr.mxu0 0.0
    %368 = vmatpush1.msra.mxu0 %v341
    %369 = vmatprep.subr.mxu0 0.0
    %370 = vmatpush1.msra.mxu0 %v342
    %371 = vmatprep.subr.mxu0 0.0
    %372 = vmatpush1.msra.mxu0 %v343
    %373 = vmatprep.subr.mxu0 0.0
    %374 = vmatpush1.msra.mxu0 %v344
    %375 = vmatprep.subr.mxu0 0.0
    %376 = vmatpush1.msra.mxu0 %v345
    %377 = vmatprep.subr.mxu0 0.0
    %378 = vmatpush1.msra.mxu0 %v346
    %379 = vmatprep.subr.mxu0 0.0
    %380 = vmatpush1.msra.mxu0 %v347
    %381 = vmatprep.subr.mxu0 0.0
    %382 = vmatpush1.msra.mxu0 %v348
    %383 = vmatprep.subr.mxu0 0.0
    %384 = vmatpush1.msra.mxu0 %v349
    %385 = vmatprep.subr.mxu0 0.0
    %386 = vmatpush1.msra.mxu0 %v350
    %387 = vmatprep.subr.mxu0 0.0
    %388 = vmatpush1.msra.mxu0 %v351
    %389 = vmatprep.subr.mxu0 0.0
    %390 = vmatpush1.msra.mxu0 %v352
    %391 = vmatprep.subr.mxu0 0.0
    %392 = vmatpush1.msra.mxu0 %v353
    %393 = vmatprep.subr.mxu0 0.0
    %394 = vmatpush1.msra.mxu0 0.0
    %395 = vmatprep.subr.mxu0 0.0
    %396 = vmatpush1.msra.mxu0 0.0
    %397 = vmatprep.subr.mxu0 0.0
    %398 = vmatpush1.msra.mxu0 0.0
    %399 = vmatprep.subr.mxu0 0.0
    %400 = vmatpush1.msra.mxu0 0.0
    %401 = vmatprep.subr.mxu0 0.0
    %402 = vmatpush1.msra.mxu0 0.0
    %403 = vmatprep.subr.mxu0 0.0
    %404 = vmatpush1.msra.mxu0 0.0
    %405 = vmatprep.subr.mxu0 0.0
    %406 = vmatpush1.msra.mxu0 0.0
    %407 = vmatprep.subr.mxu0 0.0
    %408 = vmatpush1.msra.mxu0 0.0
    %409 = vmatprep.subr.mxu0 0.0
    %410 = vmatpush1.msra.mxu0 0.0
    %411 = vmatprep.subr.mxu0 0.0
    %412 = vmatpush1.msra.mxu0 0.0
    %413 = vmatprep.subr.mxu0 0.0
    %414 = vmatpush1.msra.mxu0 0.0
    %415 = vmatprep.subr.mxu0 0.0
    %416 = vmatpush1.msra.mxu0 0.0
    %417 = vmatprep.subr.mxu0 0.0
    %418 = vmatpush1.msra.mxu0 0.0
    %419 = vmatprep.subr.mxu0 0.0
    %420 = vmatpush1.msra.mxu0 0.0
    %421 = vmatprep.subr.mxu0 0.0
    %422 = vmatpush1.msra.mxu0 0.0
    %423 = vmatprep.subr.mxu0 0.0
    %424 = vmatpush1.msra.mxu0 0.0
    %425 = vmatprep.mubr.f32.mxu0 0.0
    %426 = vmatmul.mubr.f32.gmra.mrb[0].mxu0 %v354
    %v427 = vpop.f32.mrb[0].mxu0
    %v428 = vadd.f32 %v359, %v427
    %v429 = vpop.f32.mrb[0].mxu0
    %430 = vdwg.mxu0
    %v431 = vmax.f32 %v428, 0.0
    %vm432 = vcmp.ne.f32.partialorder %v428, %v428
    %v433 = vadd.f32 %v428, 0.0
    %v434 = vand.u32 2147483647, %v428
    %v435 = vsub.f32 0.0, %v434
    %v436 = vmul.f32 %v435, 1.442695
    %v437 = vpow.pop %v436
    %v438 = vadd.f32 %v437, 1.0
    %v439 = vlog2.pop %v438
    %v440 = vmul.f32 %v439, 0.6931472
    %v441 = vmul.f32 -0.5, %v437
    %v442 = vadd.f32 %v441, 1.0
    %v443 = vmul.f32 %v442, %v437
    %v444 = vand.u32 2147483647, %v437
    %vm445 = vcmp.lt.f32.partialorder %v444, 0.0004427343
    %v446 = vsel %vm445, %v443, %v440
    %v447 = vadd.f32 %v431, %v446
    %v448 = vsel %vm432, %v433, %v447
    %v449 = vld [vmem:[%s5] sm:$0x1]
    %v451 = vlaneseq
    %v452 = vshrl.u32 %v451, 7
    %v453 = vsub.s32 0, %v452
    %v454 = vrot.slane %v449, %v453
    %v456 = vmul.f32 %v448, %v454
    %v458 = vrot.slane %v456, 1
    %v460 = vadd.f32 %v428, %v458
    %v461 = vmul.f32 %v449, -0.5
    %v462 = vmul.f32 %v461, %v449
    %v463 = vlog2.pop %v448
    %v464 = vmul.f32 %v463, 0.6931472
    %v467 = vunpack.c.l.s4 1966171168
    %v468 = vunpack.c.0.s8 %v467
    %v469 = vlaneseq
    %v470 = vshrl.u32 %v469, 7
    %v471 = vsub.s32 %v468, %v470
    %v472 = vrot.slane %v464, %v471
    %v473 = vcombine.high %v472, %v472
    %v475 = vunpack.c.l.s4 1966171168
    %v476 = vunpack.c.0.s8 %v475
    %v477 = vlaneseq
    %v478 = vshrl.u32 %v477, 7
    %v479 = vsub.s32 %v476, %v478
    %v480 = vrot.slane %v473, %v479
    %v482 = vsub.f32 %v462, %v480
    %v483 = vsub.f32 %v482, 0.9189385
    %v484 = vtanh.pop %v460
    %485 = vst [vmem:[#allocation2] sm:$0x1] %v484
    %v486 = vmul.f32 %v484, %v484
    %v487 = vsub.f32 1.0, %v486
    %v488 = vadd.f32 %v487, 1e-07
    %v489 = vlog2.pop %v488
    %v490 = vmul.f32 %v489, 0.6931472
    %v491 = vsub.f32 %v483, %v490
    %492 = vst [vmem:[#allocation4] sm:$0x1] %v491
    // Predicated region
    $region26: #{tpu_custom_call.1} parent=1 // pred_check
      _
    $region27: #{tpu_custom_call.1} parent=1 // pred_check_branch
      %494 = sbr.rel (0) target = $region29
    $region28: #{tpu_custom_call.1} parent=1 // pred_region
      %s496 = ssub.s32 16, 16
      %497 = vsyncadd [#allocation3], %s496
      %s499 = sshll.u32 [#allocation2], 4
      %s500 = int_to_ptr.vmem [resolvable:$true] %s499
      %502 = dma.vmem_to_hbm [thread:$0]  %s500, 16, %s6, [#allocation3]
    $region29: #{tpu_custom_call.1} parent=1 // pred_fallthru
      _
    // Predicated region
    $region30: #{tpu_custom_call.1} parent=1 // pred_check
      _
    $region31: #{tpu_custom_call.1} parent=1 // pred_check_branch
      %504 = sbr.rel (0) target = $region33
    $region32: #{tpu_custom_call.1} parent=1 // pred_region
      %s506 = ssub.s32 16, 16
      %507 = vsyncadd [#allocation5], %s506
      %s509 = sshll.u32 [#allocation4], 4
      %s510 = int_to_ptr.vmem [resolvable:$true] %s509
      %512 = dma.vmem_to_hbm [thread:$0]  %s510, 16, %s7, [#allocation5]
    $region33: #{tpu_custom_call.1} parent=1 // pred_fallthru
      _
    // Predicated region
    $region34: #{tpu_custom_call.1} parent=1 // pred_check
      _
    $region35: #{tpu_custom_call.1} parent=1 // pred_check_branch
      %514 = sbr.rel (0) target = $region37
    $region36: #{tpu_custom_call.1} parent=1 // pred_region
      %515 = dma.done [#allocation3], 16
    $region37: #{tpu_custom_call.1} parent=1 // pred_fallthru
      _
    // Predicated region
    $region38: #{tpu_custom_call.1} parent=1 // pred_check
      _
    $region39: #{tpu_custom_call.1} parent=1 // pred_check_branch
      %517 = sbr.rel (0) target = $region41
    $region40: #{tpu_custom_call.1} parent=1 // pred_region
      %518 = dma.done [#allocation5], 16
    $region41: #{tpu_custom_call.1} parent=1 // pred_fallthru
      _
    %519 = vsyncpa [#allocation3], 1
    %520 = vsyncpa [#allocation5], 1

</llo_original>
